<compile_context>
chip_gen: v7x
topology: tpu7x:2x2x1
jax: 0.10.0
libtpu: 0.0.40
codegen_flags: <defaults>
</compile_context>

<pallas_src>
import math

import jax
import jax.numpy as jnp
from jax import lax
from jax.experimental import pallas as pl
from jax.experimental.pallas import tpu as pltpu


# ----------------------------------------------------------------------------
# Pallas kernels
# ----------------------------------------------------------------------------
def _router_kernel(x_ref, wt_ref, probs_ref, loss_ref):
    # x_ref:  (B, D)   flattened input
    # wt_ref: (D, E)   router weight, pre-transposed
    # probs_ref: (B, E) softmax(router_logits)
    # loss_ref:  (1, 1) MSE(mean(probs, axis=0), 1/E)
    # TODO(synk): for very large D = C*H*W, tile the contraction dim with an
    # accumulator + pl.when init/finalize instead of one unblocked dot.
    logits = jnp.dot(x_ref[...], wt_ref[...], preferred_element_type=jnp.float32)
    m = jnp.max(logits, axis=-1, keepdims=True)
    e = jnp.exp(logits - m)
    probs = e / jnp.sum(e, axis=-1, keepdims=True)
    probs_ref[...] = probs

    num_experts = wt_ref.shape[1]
    avg = jnp.mean(probs, axis=0, keepdims=True)              # (1, E)
    diff = avg - (1.0 / num_experts)
    loss_ref[...] = jnp.mean(diff * diff, keepdims=True)      # (1, 1)


def _fused_expert_conv_kernel(xp_ref, w_ref, b_ref, o_ref):
    # xp_ref: (1, H+2, W+2, C)  zero-padded NHWC activations, one batch element
    # w_ref:  (9, K*C, C)       per-tap fused weights; row index = i*C + c_out
    # b_ref:  (K*C, 1)          fused biases of the K selected experts
    # o_ref:  (1, K*C, H*W)     lane-dense channels-first output
    hp, wp, c = xp_ref.shape[1], xp_ref.shape[2], xp_ref.shape[3]
    h, w = hp - 2, wp - 2
    kc = w_ref.shape[1]

    acc = jnp.zeros((kc, h * w), jnp.float32)
    # 3x3 conv == 9 shifted-view matmuls accumulated in f32 on the MXU.
    # Contract both operands on their channel dim (q @ k.T pattern) so the
    # accumulator/output stay lane-dense along H*W.
    for t in range(9):
        dy, dx = t // 3, t % 3
        sl = xp_ref[0, dy:dy + h, dx:dx + w, :].reshape(h * w, c)   # (H*W, C)
        acc = acc + lax.dot_general(
            w_ref[t], sl,
            dimension_numbers=(((1,), (1,)), ((), ())),
            preferred_element_type=jnp.float32)                     # (K*C, H*W)
    acc = acc + b_ref[...]                                          # VPU broadcast add
    o_ref[0] = acc.astype(o_ref.dtype)


# ----------------------------------------------------------------------------
# Module
# ----------------------------------------------------------------------------
class SparseMoEConvBlockPallas:
    def __init__(self, router_dim, in_channels, num_experts=8, top_k=2, *, key):
        self.num_experts = num_experts
        self.in_channels = in_channels
        self.router_dim = router_dim
        self.top_k = top_k

        kr, kw, kb = jax.random.split(key, 3)
        # router: Linear(router_dim, num_experts, bias=False), xavier_uniform
        bound_r = math.sqrt(6.0 / (router_dim + num_experts))
        self.router_w = jax.random.uniform(
            kr, (num_experts, router_dim), jnp.float32, -bound_r, bound_r)
        self.router_wt = jnp.asarray(self.router_w.T)          # (D, E), precomputed
        # experts: Conv2d(C, C, 3, padding=1) each -> weight (E, Cout, Cin, 3, 3)
        fan_in = in_channels * 9
        bound = 1.0 / math.sqrt(fan_in)
        self.expert_w = jax.random.uniform(
            kw, (num_experts, in_channels, in_channels, 3, 3),
            jnp.float32, -bound, bound)
        self.expert_b = jax.random.uniform(
            kb, (num_experts, in_channels), jnp.float32, -bound, bound)
        self.experts_used = jnp.zeros((num_experts,), jnp.float32)

    def __call__(self, x):
        B, C, H, W = x.shape
        E, K = self.num_experts, self.top_k
        KC = K * C
        assert C == self.in_channels and C * H * W == self.router_dim

        # ---------------- router (Pallas kernel #1) ----------------
        x_flat = x.reshape(B, -1)
        probs, router_loss = pl.pallas_call(
            _router_kernel,
            out_shape=(jax.ShapeDtypeStruct((B, E), jnp.float32),
                       jax.ShapeDtypeStruct((1, 1), jnp.float32)),
            in_specs=[pl.BlockSpec(memory_space=pltpu.MemorySpace.VMEM),
                      pl.BlockSpec(memory_space=pltpu.MemorySpace.VMEM)],
            out_specs=(pl.BlockSpec(memory_space=pltpu.MemorySpace.VMEM),
                       pl.BlockSpec(memory_space=pltpu.MemorySpace.VMEM)),
        )(x_flat, self.router_wt)
        router_loss = router_loss[0, 0]

        # top-k routing (tiny, glue). Semantics follow torch.topk (descending).
        routing_weights, selected_experts = jax.lax.top_k(probs, K)   # (B, K)
        del routing_weights  # computed but unused in the reference forward
        sel = selected_experts[0].astype(jnp.int32)                   # (K,)

        # TODO(synk): stateful `experts_used` buffer accumulation kept in plain
        # JAX; under jax.jit it should be returned functionally instead of
        # mutating Python object state.
        expert_mask = jnp.zeros((B, E), jnp.float32).at[
            jnp.arange(B)[:, None], selected_experts].set(1.0)
        self.experts_used = self.experts_used + expert_mask.sum(axis=0)

        # --------- gather + fuse the K selected experts' params (tiny) ---------
        # w_taps[ky*3+kx, i*C + co, ci] = expert_w[sel[i], co, ci, ky, kx]
        w_sel = self.expert_w[sel]                                    # (K, Co, Ci, 3, 3)
        w_taps = jnp.transpose(w_sel, (3, 4, 0, 1, 2)).reshape(9, KC, C)
        b_fused = self.expert_b[sel].reshape(KC, 1)                   # (K*C, 1)

        # channels-last, zero-padded activations (single pass over x in XLA)
        x_nhwc = jnp.transpose(x, (0, 2, 3, 1))                       # (B, H, W, C)
        xp = jnp.pad(x_nhwc, ((0, 0), (1, 1), (1, 1), (0, 0)))        # (B, H+2, W+2, C)

        # ---------------- fused expert convs (Pallas kernel #2) ----------------
        # Grid over batch only; per-step VMEM is tiny at these shapes.
        # TODO(synk): for large H*W add a row-tile grid axis with halo handling.
        out = pl.pallas_call(
            _fused_expert_conv_kernel,
            out_shape=jax.ShapeDtypeStruct((B, KC, H * W), jnp.float32),
            grid=(B,),
            in_specs=[
                pl.BlockSpec((1, H + 2, W + 2, C), lambda b: (b, 0, 0, 0)),
                pl.BlockSpec((9, KC, C), lambda b: (0, 0, 0)),
                pl.BlockSpec((KC, 1), lambda b: (0, 0)),
            ],
            out_specs=pl.BlockSpec((1, KC, H * W), lambda b: (b, 0, 0)),
            compiler_params=pltpu.CompilerParams(
                dimension_semantics=("parallel",)),
        )(xp, w_taps, b_fused)

        # (B, K*C, H*W) -> (B, K*C, H, W): pure reshape, no transpose needed;
        # expert i occupies channels [i*C, (i+1)*C).
        expert_outputs = out.reshape(B, KC, H, W)
        return expert_outputs, router_loss


# ----------------------------------------------------------------------------
# Pure-JAX reference (sanity check of the Pallas kernels)
# ----------------------------------------------------------------------------
def _reference_forward(block, x):
    B, C, H, W = x.shape
    E = block.num_experts
    logits = x.reshape(B, -1) @ block.router_w.T
    probs = jax.nn.softmax(logits, axis=1)
    avg = probs.mean(axis=0)
    loss = jnp.mean((avg - 1.0 / E) ** 2)
    _, sel = jax.lax.top_k(probs, block.top_k)
    sel0 = sel[0]
    outs = []
    for i in range(block.top_k):
        w_i = block.expert_w[sel0[i]]
        b_i = block.expert_b[sel0[i]]
        o = jax.lax.conv_general_dilated(
            x, w_i, window_strides=(1, 1), padding="SAME",
            dimension_numbers=("NCHW", "OIHW", "NCHW"))
        outs.append(o + b_i[None, :, None, None])
    return jnp.concatenate(outs, axis=1), loss


if __name__ == "__main__":
    key = jax.random.PRNGKey(0)
    B, C, H, W = 2, 4, 16, 16
    num_experts, top_k = 8, 2
    router_dim = C * H * W

    k_x, k_params = jax.random.split(key)
    x = jax.random.normal(k_x, (B, C, H, W), jnp.float32)

    block = SparseMoEConvBlockPallas(router_dim, C, num_experts=num_experts,
                                     top_k=top_k, key=k_params)

    expert_outputs, router_loss = block(x)
    jax.block_until_ready((expert_outputs, router_loss))

    ref_out, ref_loss = _reference_forward(block, x)
    assert expert_outputs.shape == (B, C * top_k, H, W)
    assert jnp.allclose(expert_outputs, ref_out, atol=1e-4, rtol=1e-4)
    assert jnp.allclose(router_loss, ref_loss, atol=1e-5, rtol=1e-4)

    print("KERNEL_OK")
</pallas_src>

<mosaic_0001>
module attributes {stable_mosaic.version = 11 : i64} {
  func.func @_router_kernel(%arg0: memref<2x1024xf32, #tpu.memory_space<vmem>>, %arg1: memref<1024x8xf32, #tpu.memory_space<vmem>>, %arg2: memref<2x8xf32, #tpu.memory_space<vmem>>, %arg3: memref<1x1xf32, #tpu.memory_space<vmem>>) attributes {dimension_semantics = [], scalar_prefetch = 0 : i64, scratch_operands = 0 : i64, tpu.core_type = #tpu.core_type<tc>} {
    %c0 = arith.constant 0 : index
    %c0_0 = arith.constant 0 : index
    %0 = vector.load %arg0[%c0, %c0_0] : memref<2x1024xf32, #tpu.memory_space<vmem>>, vector<2x1024xf32>
    %c0_1 = arith.constant 0 : index
    %c0_2 = arith.constant 0 : index
    %1 = vector.load %arg1[%c0_1, %c0_2] : memref<1024x8xf32, #tpu.memory_space<vmem>>, vector<1024x8xf32>
    %cst = arith.constant dense<0.000000e+00> : vector<2x8xf32>
    %2 = tpu.matmul %0, %1, %cst {dimension_numbers = #tpu.dot_dimension_numbers<[1], [0], [0], [1], [0, 0, 1, 1], [], []>} : vector<2x1024xf32>, vector<1024x8xf32>, vector<2x8xf32> -> vector<2x8xf32>
    %cst_3 = arith.constant dense<0xFF800000> : vector<2xf32>
    %3 = vector.multi_reduction <maximumf>, %2, %cst_3 [1] : vector<2x8xf32> to vector<2xf32>
    %4 = vector.shape_cast %3 : vector<2xf32> to vector<2x1xf32>
    %5 = vector.broadcast %4 : vector<2x1xf32> to vector<2x8xf32>
    %6 = arith.subf %2, %5 : vector<2x8xf32>
    %7 = math.exp %6 : vector<2x8xf32>
    %cst_4 = arith.constant dense<0.000000e+00> : vector<2xf32>
    %8 = vector.multi_reduction <add>, %7, %cst_4 [1] : vector<2x8xf32> to vector<2xf32>
    %9 = vector.shape_cast %8 : vector<2xf32> to vector<2x1xf32>
    %10 = vector.broadcast %9 : vector<2x1xf32> to vector<2x8xf32>
    %11 = arith.divf %7, %10 : vector<2x8xf32>
    %c0_5 = arith.constant 0 : index
    %c0_6 = arith.constant 0 : index
    %12 = vector.load %arg2[%c0_5, %c0_6] : memref<2x8xf32, #tpu.memory_space<vmem>>, vector<2x8xf32>
    tpu.vector_store %arg2[%c0_5, %c0_6], %11 {strides = array<i32>} : memref<2x8xf32, #tpu.memory_space<vmem>>, vector<2x8xf32>,
    %cst_7 = arith.constant dense<0.000000e+00> : vector<8xf32>
    %13 = vector.multi_reduction <add>, %11, %cst_7 [0] : vector<2x8xf32> to vector<8xf32>
    %14 = vector.shape_cast %13 : vector<8xf32> to vector<1x8xf32>
    %cst_8 = arith.constant 2.000000e+00 : f32
    %15 = vector.broadcast %cst_8 : f32 to vector<1x8xf32>
    %16 = arith.divf %14, %15 : vector<1x8xf32>
    %cst_9 = arith.constant 1.250000e-01 : f32
    %17 = vector.broadcast %cst_9 : f32 to vector<1x8xf32>
    %18 = arith.subf %16, %17 : vector<1x8xf32>
    %19 = arith.mulf %18, %18 : vector<1x8xf32>
    %20 = vector.shape_cast %19 : vector<1x8xf32> to vector<1x1x8xf32>
    %cst_10 = arith.constant dense<0.000000e+00> : vector<1xf32>
    %21 = vector.multi_reduction <add>, %20, %cst_10 [1, 2] : vector<1x1x8xf32> to vector<1xf32>
    %22 = vector.shape_cast %21 : vector<1xf32> to vector<1x1x1xf32>
    %23 = vector.extract %22[0, 0, 0] : f32 from vector<1x1x1xf32>
    %24 = vector.broadcast %23 : f32 to vector<1x1xf32>
    %cst_11 = arith.constant 8.000000e+00 : f32
    %25 = vector.broadcast %cst_11 : f32 to vector<1x1xf32>
    %26 = arith.divf %24, %25 : vector<1x1xf32>
    %c0_12 = arith.constant 0 : index
    %c0_13 = arith.constant 0 : index
    %27 = vector.load %arg3[%c0_12, %c0_13] : memref<1x1xf32, #tpu.memory_space<vmem>>, vector<1x1xf32>
    tpu.vector_store %arg3[%c0_12, %c0_13], %26 {strides = array<i32>} : memref<1x1xf32, #tpu.memory_space<vmem>>, vector<1x1xf32>,
    return
  }
}

</mosaic_0001>

<llo_original>
// kernel: tpu_custom_call.1
$region0: #{tpu_custom_call.1}
  #allocation0 [shape = 'u32[]', space=smem, size = 0x4, offset = 0x4, fixed_abs, tag = 'smem constant byte address 0x4 - core index']
  #allocation1 [shape = 'u32[144,128]{1,0:T(1,128)}', space=vmem, size = 0x12000, scoped, tag = 'internal scratch']
  %s0 = inlined_call_operand.vmem [shape: f32[2,1024], index: 0, kind: input, shape index: {}]
  %s1 = inlined_call_operand.vmem [shape: f32[1024,8], index: 1, kind: input, shape index: {}]
  %s2 = inlined_call_operand.hbm [shape: f32[2,8], index: 2, kind: output, shape index: {0}]
  %s3 = inlined_call_operand.hbm [shape: f32[1,1], index: 3, kind: output, shape index: {1}]
  %4 = xla_tuple %s2, %s3
  %s5 = sld [smem:[#allocation0]]
  $region26: #{tpu_custom_call.1} parent=0
    _
  %s7 = ssub.s32 1, %s5
  %s8 = scalar_select 0, %s7, %s5
  $region1: #{tpu_custom_call.1} parent=0
    #allocation2 [shape = 'u8[1024]{0}', space=vmem, size = 0x400, scoped, tag = 'output window, operand 0, single buffered']
    #allocation3 [shape = 's32[1]{0}', space=sflag, size = 0x4, scoped, tag = 'scoped memory for tpu_custom_call.1']
    #allocation4 [shape = 'u8[512]{0}', space=vmem, size = 0x400, scoped, tag = 'output window, operand 1, single buffered']
    #allocation5 [shape = 's32[1]{0}', space=sflag, size = 0x4, scoped, tag = 'scoped memory for tpu_custom_call.1']
    %9 = vsyncpa [#allocation3], 0
    %10 = vsyncpa [#allocation5], 0
    // Predicated region
    $region2: #{tpu_custom_call.1} parent=1 // pred_check
      _
    $region3: #{tpu_custom_call.1} parent=1 // pred_check_branch
      %12 = sbr.rel (0) target = $region5
    $region4: #{tpu_custom_call.1} parent=1 // pred_region
      _
    $region5: #{tpu_custom_call.1} parent=1 // pred_fallthru
      _
    // Predicated region
    $region6: #{tpu_custom_call.1} parent=1 // pred_check
      _
    $region7: #{tpu_custom_call.1} parent=1 // pred_check_branch
      %14 = sbr.rel (0) target = $region9
    $region8: #{tpu_custom_call.1} parent=1 // pred_region
      _
    $region9: #{tpu_custom_call.1} parent=1 // pred_fallthru
      _
    %v15 = vld [vmem:[%s0] sm:$0xff]
    %v16 = vld [vmem:[%s0 + $0x8] sm:$0xff]
    %v17 = vld [vmem:[%s1] sm:$0xff]
    %v18 = vld [vmem:[%s1 + $0x8] sm:$0xff]
    %v19 = vld [vmem:[%s1 + $0x10] sm:$0xff]
    %v20 = vld [vmem:[%s1 + $0x18] sm:$0xff]
    %v21 = vld [vmem:[%s1 + $0x20] sm:$0xff]
    %v22 = vld [vmem:[%s1 + $0x28] sm:$0xff]
    %v23 = vld [vmem:[%s1 + $0x30] sm:$0xff]
    %v24 = vld [vmem:[%s1 + $0x38] sm:$0xff]
    %v25 = vld [vmem:[%s1 + $0x40] sm:$0xff]
    %v26 = vld [vmem:[%s1 + $0x48] sm:$0xff]
    %v27 = vld [vmem:[%s1 + $0x50] sm:$0xff]
    %v28 = vld [vmem:[%s1 + $0x58] sm:$0xff]
    %v29 = vld [vmem:[%s1 + $0x60] sm:$0xff]
    %v30 = vld [vmem:[%s1 + $0x68] sm:$0xff]
    %v31 = vld [vmem:[%s1 + $0x70] sm:$0xff]
    %v32 = vld [vmem:[%s1 + $0x78] sm:$0xff]
    %v33 = vld [vmem:[%s1 + $0x80] sm:$0xff]
    %v34 = vld [vmem:[%s1 + $0x88] sm:$0xff]
    %v35 = vld [vmem:[%s1 + $0x90] sm:$0xff]
    %v36 = vld [vmem:[%s1 + $0x98] sm:$0xff]
    %v37 = vld [vmem:[%s1 + $0xa0] sm:$0xff]
    %v38 = vld [vmem:[%s1 + $0xa8] sm:$0xff]
    %v39 = vld [vmem:[%s1 + $0xb0] sm:$0xff]
    %v40 = vld [vmem:[%s1 + $0xb8] sm:$0xff]
    %v41 = vld [vmem:[%s1 + $0xc0] sm:$0xff]
    %v42 = vld [vmem:[%s1 + $0xc8] sm:$0xff]
    %v43 = vld [vmem:[%s1 + $0xd0] sm:$0xff]
    %v44 = vld [vmem:[%s1 + $0xd8] sm:$0xff]
    %v45 = vld [vmem:[%s1 + $0xe0] sm:$0xff]
    %v46 = vld [vmem:[%s1 + $0xe8] sm:$0xff]
    %v47 = vld [vmem:[%s1 + $0xf0] sm:$0xff]
    %v48 = vld [vmem:[%s1 + $0xf8] sm:$0xff]
    %v49 = vld [vmem:[%s1 + $0x100] sm:$0xff]
    %v50 = vld [vmem:[%s1 + $0x108] sm:$0xff]
    %v51 = vld [vmem:[%s1 + $0x110] sm:$0xff]
    %v52 = vld [vmem:[%s1 + $0x118] sm:$0xff]
    %v53 = vld [vmem:[%s1 + $0x120] sm:$0xff]
    %v54 = vld [vmem:[%s1 + $0x128] sm:$0xff]
    %v55 = vld [vmem:[%s1 + $0x130] sm:$0xff]
    %v56 = vld [vmem:[%s1 + $0x138] sm:$0xff]
    %v57 = vld [vmem:[%s1 + $0x140] sm:$0xff]
    %v58 = vld [vmem:[%s1 + $0x148] sm:$0xff]
    %v59 = vld [vmem:[%s1 + $0x150] sm:$0xff]
    %v60 = vld [vmem:[%s1 + $0x158] sm:$0xff]
    %v61 = vld [vmem:[%s1 + $0x160] sm:$0xff]
    %v62 = vld [vmem:[%s1 + $0x168] sm:$0xff]
    %v63 = vld [vmem:[%s1 + $0x170] sm:$0xff]
    %v64 = vld [vmem:[%s1 + $0x178] sm:$0xff]
    %v65 = vld [vmem:[%s1 + $0x180] sm:$0xff]
    %v66 = vld [vmem:[%s1 + $0x188] sm:$0xff]
    %v67 = vld [vmem:[%s1 + $0x190] sm:$0xff]
    %v68 = vld [vmem:[%s1 + $0x198] sm:$0xff]
    %v69 = vld [vmem:[%s1 + $0x1a0] sm:$0xff]
    %v70 = vld [vmem:[%s1 + $0x1a8] sm:$0xff]
    %v71 = vld [vmem:[%s1 + $0x1b0] sm:$0xff]
    %v72 = vld [vmem:[%s1 + $0x1b8] sm:$0xff]
    %v73 = vld [vmem:[%s1 + $0x1c0] sm:$0xff]
    %v74 = vld [vmem:[%s1 + $0x1c8] sm:$0xff]
    %v75 = vld [vmem:[%s1 + $0x1d0] sm:$0xff]
    %v76 = vld [vmem:[%s1 + $0x1d8] sm:$0xff]
    %v77 = vld [vmem:[%s1 + $0x1e0] sm:$0xff]
    %v78 = vld [vmem:[%s1 + $0x1e8] sm:$0xff]
    %v79 = vld [vmem:[%s1 + $0x1f0] sm:$0xff]
    %v80 = vld [vmem:[%s1 + $0x1f8] sm:$0xff]
    %v81 = vld [vmem:[%s1 + $0x200] sm:$0xff]
    %v82 = vld [vmem:[%s1 + $0x208] sm:$0xff]
    %v83 = vld [vmem:[%s1 + $0x210] sm:$0xff]
    %v84 = vld [vmem:[%s1 + $0x218] sm:$0xff]
    %v85 = vld [vmem:[%s1 + $0x220] sm:$0xff]
    %v86 = vld [vmem:[%s1 + $0x228] sm:$0xff]
    %v87 = vld [vmem:[%s1 + $0x230] sm:$0xff]
    %v88 = vld [vmem:[%s1 + $0x238] sm:$0xff]
    %v89 = vld [vmem:[%s1 + $0x240] sm:$0xff]
    %v90 = vld [vmem:[%s1 + $0x248] sm:$0xff]
    %v91 = vld [vmem:[%s1 + $0x250] sm:$0xff]
    %v92 = vld [vmem:[%s1 + $0x258] sm:$0xff]
    %v93 = vld [vmem:[%s1 + $0x260] sm:$0xff]
    %v94 = vld [vmem:[%s1 + $0x268] sm:$0xff]
    %v95 = vld [vmem:[%s1 + $0x270] sm:$0xff]
    %v96 = vld [vmem:[%s1 + $0x278] sm:$0xff]
    %v97 = vld [vmem:[%s1 + $0x280] sm:$0xff]
    %v98 = vld [vmem:[%s1 + $0x288] sm:$0xff]
    %v99 = vld [vmem:[%s1 + $0x290] sm:$0xff]
    %v100 = vld [vmem:[%s1 + $0x298] sm:$0xff]
    %v101 = vld [vmem:[%s1 + $0x2a0] sm:$0xff]
    %v102 = vld [vmem:[%s1 + $0x2a8] sm:$0xff]
    %v103 = vld [vmem:[%s1 + $0x2b0] sm:$0xff]
    %v104 = vld [vmem:[%s1 + $0x2b8] sm:$0xff]
    %v105 = vld [vmem:[%s1 + $0x2c0] sm:$0xff]
    %v106 = vld [vmem:[%s1 + $0x2c8] sm:$0xff]
    %v107 = vld [vmem:[%s1 + $0x2d0] sm:$0xff]
    %v108 = vld [vmem:[%s1 + $0x2d8] sm:$0xff]
    %v109 = vld [vmem:[%s1 + $0x2e0] sm:$0xff]
    %v110 = vld [vmem:[%s1 + $0x2e8] sm:$0xff]
    %v111 = vld [vmem:[%s1 + $0x2f0] sm:$0xff]
    %v112 = vld [vmem:[%s1 + $0x2f8] sm:$0xff]
    %v113 = vld [vmem:[%s1 + $0x300] sm:$0xff]
    %v114 = vld [vmem:[%s1 + $0x308] sm:$0xff]
    %v115 = vld [vmem:[%s1 + $0x310] sm:$0xff]
    %v116 = vld [vmem:[%s1 + $0x318] sm:$0xff]
    %v117 = vld [vmem:[%s1 + $0x320] sm:$0xff]
    %v118 = vld [vmem:[%s1 + $0x328] sm:$0xff]
    %v119 = vld [vmem:[%s1 + $0x330] sm:$0xff]
    %v120 = vld [vmem:[%s1 + $0x338] sm:$0xff]
    %v121 = vld [vmem:[%s1 + $0x340] sm:$0xff]
    %v122 = vld [vmem:[%s1 + $0x348] sm:$0xff]
    %v123 = vld [vmem:[%s1 + $0x350] sm:$0xff]
    %v124 = vld [vmem:[%s1 + $0x358] sm:$0xff]
    %v125 = vld [vmem:[%s1 + $0x360] sm:$0xff]
    %v126 = vld [vmem:[%s1 + $0x368] sm:$0xff]
    %v127 = vld [vmem:[%s1 + $0x370] sm:$0xff]
    %v128 = vld [vmem:[%s1 + $0x378] sm:$0xff]
    %v129 = vld [vmem:[%s1 + $0x380] sm:$0xff]
    %v130 = vld [vmem:[%s1 + $0x388] sm:$0xff]
    %v131 = vld [vmem:[%s1 + $0x390] sm:$0xff]
    %v132 = vld [vmem:[%s1 + $0x398] sm:$0xff]
    %v133 = vld [vmem:[%s1 + $0x3a0] sm:$0xff]
    %v134 = vld [vmem:[%s1 + $0x3a8] sm:$0xff]
    %v135 = vld [vmem:[%s1 + $0x3b0] sm:$0xff]
    %v136 = vld [vmem:[%s1 + $0x3b8] sm:$0xff]
    %v137 = vld [vmem:[%s1 + $0x3c0] sm:$0xff]
    %v138 = vld [vmem:[%s1 + $0x3c8] sm:$0xff]
    %v139 = vld [vmem:[%s1 + $0x3d0] sm:$0xff]
    %v140 = vld [vmem:[%s1 + $0x3d8] sm:$0xff]
    %v141 = vld [vmem:[%s1 + $0x3e0] sm:$0xff]
    %v142 = vld [vmem:[%s1 + $0x3e8] sm:$0xff]
    %v143 = vld [vmem:[%s1 + $0x3f0] sm:$0xff]
    %v144 = vld [vmem:[%s1 + $0x3f8] sm:$0xff]
    %v147 = vcombine.high %v15, %v15
    %v149 = vunpack.c.l.s4 1983009808
    %v150 = vunpack.c.0.s8 %v149
    %v151 = vlaneseq
    %v152 = vshrl.u32 %v151, 7
    %v153 = vsub.s32 %v150, %v152
    %v154 = vrot.slane %v15, %v153
    %v156 = vunpack.c.l.s4 1983009808
    %v157 = vunpack.c.0.s8 %v156
    %v158 = vlaneseq
    %v159 = vshrl.u32 %v158, 7
    %v160 = vsub.s32 %v157, %v159
    %v161 = vrot.slane %v147, %v160
    %v162 = vcombine.high %v154, %v154
    %v163 = vcombine.high %v161, %v161
    %v164 = vcombine.high %v16, %v16
    %v166 = vunpack.c.l.s4 1983009808
    %v167 = vunpack.c.0.s8 %v166
    %v168 = vlaneseq
    %v169 = vshrl.u32 %v168, 7
    %v170 = vsub.s32 %v167, %v169
    %v171 = vrot.slane %v16, %v170
    %v173 = vunpack.c.l.s4 1983009808
    %v174 = vunpack.c.0.s8 %v173
    %v175 = vlaneseq
    %v176 = vshrl.u32 %v175, 7
    %v177 = vsub.s32 %v174, %v176
    %v178 = vrot.slane %v164, %v177
    %v179 = vcombine.high %v171, %v171
    %v180 = vcombine.high %v178, %v178
    %189 = vmatprep.subr.mxu0 0.0
    %190 = vmatpush1.msra.mxu0 %v17
    %191 = vmatprep.subr.mxu0 0.0
    %192 = vmatpush1.msra.mxu0 %v18
    %193 = vmatprep.subr.mxu0 0.0
    %194 = vmatpush1.msra.mxu0 %v19
    %195 = vmatprep.subr.mxu0 0.0
    %196 = vmatpush1.msra.mxu0 %v20
    %197 = vmatprep.subr.mxu0 0.0
    %198 = vmatpush1.msra.mxu0 %v21
    %199 = vmatprep.subr.mxu0 0.0
    %200 = vmatpush1.msra.mxu0 %v22
    %201 = vmatprep.subr.mxu0 0.0
    %202 = vmatpush1.msra.mxu0 %v23
    %203 = vmatprep.subr.mxu0 0.0
    %204 = vmatpush1.msra.mxu0 %v24
    %205 = vmatprep.subr.mxu0 0.0
    %206 = vmatpush1.msra.mxu0 %v25
    %207 = vmatprep.subr.mxu0 0.0
    %208 = vmatpush1.msra.mxu0 %v26
    %209 = vmatprep.subr.mxu0 0.0
    %210 = vmatpush1.msra.mxu0 %v27
    %211 = vmatprep.subr.mxu0 0.0
    %212 = vmatpush1.msra.mxu0 %v28
    %213 = vmatprep.subr.mxu0 0.0
    %214 = vmatpush1.msra.mxu0 %v29
    %215 = vmatprep.subr.mxu0 0.0
    %216 = vmatpush1.msra.mxu0 %v30
    %217 = vmatprep.subr.mxu0 0.0
    %218 = vmatpush1.msra.mxu0 %v31
    %219 = vmatprep.subr.mxu0 0.0
    %220 = vmatpush1.msra.mxu0 %v32
    %221 = vmatprep.subr.mxu0 0.0
    %222 = vmatpush1.msra.mxu0 %v33
    %223 = vmatprep.subr.mxu0 0.0
    %224 = vmatpush1.msra.mxu0 %v34
    %225 = vmatprep.subr.mxu0 0.0
    %226 = vmatpush1.msra.mxu0 %v35
    %227 = vmatprep.subr.mxu0 0.0
    %228 = vmatpush1.msra.mxu0 %v36
    %229 = vmatprep.subr.mxu0 0.0
    %230 = vmatpush1.msra.mxu0 %v37
    %231 = vmatprep.subr.mxu0 0.0
    %232 = vmatpush1.msra.mxu0 %v38
    %233 = vmatprep.subr.mxu0 0.0
    %234 = vmatpush1.msra.mxu0 %v39
    %235 = vmatprep.subr.mxu0 0.0
    %236 = vmatpush1.msra.mxu0 %v40
    %237 = vmatprep.subr.mxu0 0.0
    %238 = vmatpush1.msra.mxu0 %v41
    %239 = vmatprep.subr.mxu0 0.0
    %240 = vmatpush1.msra.mxu0 %v42
    %241 = vmatprep.subr.mxu0 0.0
    %242 = vmatpush1.msra.mxu0 %v43
    %243 = vmatprep.subr.mxu0 0.0
    %244 = vmatpush1.msra.mxu0 %v44
    %245 = vmatprep.subr.mxu0 0.0
    %246 = vmatpush1.msra.mxu0 %v45
    %247 = vmatprep.subr.mxu0 0.0
    %248 = vmatpush1.msra.mxu0 %v46
    %249 = vmatprep.subr.mxu0 0.0
    %250 = vmatpush1.msra.mxu0 %v47
    %251 = vmatprep.subr.mxu0 0.0
    %252 = vmatpush1.msra.mxu0 %v48
    %253 = vmatprep.mubr.f32.mxu0 %v162
    %254 = vmatmul.mubr.f32.gmra.mrb[0].mxu0 %v154
    %v255 = vpop.f32.mrb[0].mxu0
    %v256 = vadd.f32 0.0, %v255
    %v257 = vpop.f32.mrb[0].mxu0
    %258 = vdwg.mxu0
    %259 = vmatprep.subr.mxu0 0.0
    %260 = vmatpush1.msra.mxu0 %v49
    %261 = vmatprep.subr.mxu0 0.0
    %262 = vmatpush1.msra.mxu0 %v50
    %263 = vmatprep.subr.mxu0 0.0
    %264 = vmatpush1.msra.mxu0 %v51
    %265 = vmatprep.subr.mxu0 0.0
    %266 = vmatpush1.msra.mxu0 %v52
    %267 = vmatprep.subr.mxu0 0.0
    %268 = vmatpush1.msra.mxu0 %v53
    %269 = vmatprep.subr.mxu0 0.0
    %270 = vmatpush1.msra.mxu0 %v54
    %271 = vmatprep.subr.mxu0 0.0
    %272 = vmatpush1.msra.mxu0 %v55
    %273 = vmatprep.subr.mxu0 0.0
    %274 = vmatpush1.msra.mxu0 %v56
    %275 = vmatprep.subr.mxu0 0.0
    %276 = vmatpush1.msra.mxu0 %v57
    %277 = vmatprep.subr.mxu0 0.0
    %278 = vmatpush1.msra.mxu0 %v58
    %279 = vmatprep.subr.mxu0 0.0
    %280 = vmatpush1.msra.mxu0 %v59
    %281 = vmatprep.subr.mxu0 0.0
    %282 = vmatpush1.msra.mxu0 %v60
    %283 = vmatprep.subr.mxu0 0.0
    %284 = vmatpush1.msra.mxu0 %v61
    %285 = vmatprep.subr.mxu0 0.0
    %286 = vmatpush1.msra.mxu0 %v62
    %287 = vmatprep.subr.mxu0 0.0
    %288 = vmatpush1.msra.mxu0 %v63
    %289 = vmatprep.subr.mxu0 0.0
    %290 = vmatpush1.msra.mxu0 %v64
    %291 = vmatprep.subr.mxu0 0.0
    %292 = vmatpush1.msra.mxu0 %v65
    %293 = vmatprep.subr.mxu0 0.0
    %294 = vmatpush1.msra.mxu0 %v66
    %295 = vmatprep.subr.mxu0 0.0
    %296 = vmatpush1.msra.mxu0 %v67
    %297 = vmatprep.subr.mxu0 0.0
    %298 = vmatpush1.msra.mxu0 %v68
    %299 = vmatprep.subr.mxu0 0.0
    %300 = vmatpush1.msra.mxu0 %v69
    %301 = vmatprep.subr.mxu0 0.0
    %302 = vmatpush1.msra.mxu0 %v70
    %303 = vmatprep.subr.mxu0 0.0
    %304 = vmatpush1.msra.mxu0 %v71
    %305 = vmatprep.subr.mxu0 0.0
    %306 = vmatpush1.msra.mxu0 %v72
    %307 = vmatprep.subr.mxu0 0.0
    %308 = vmatpush1.msra.mxu0 %v73
    %309 = vmatprep.subr.mxu0 0.0
    %310 = vmatpush1.msra.mxu0 %v74
    %311 = vmatprep.subr.mxu0 0.0
    %312 = vmatpush1.msra.mxu0 %v75
    %313 = vmatprep.subr.mxu0 0.0
    %314 = vmatpush1.msra.mxu0 %v76
    %315 = vmatprep.subr.mxu0 0.0
    %316 = vmatpush1.msra.mxu0 %v77
    %317 = vmatprep.subr.mxu0 0.0
    %318 = vmatpush1.msra.mxu0 %v78
    %319 = vmatprep.subr.mxu0 0.0
    %320 = vmatpush1.msra.mxu0 %v79
    %321 = vmatprep.subr.mxu0 0.0
    %322 = vmatpush1.msra.mxu0 %v80
    %323 = vmatprep.mubr.f32.mxu0 %v163
    %324 = vmatmul.mubr.f32.gmra.mrb[0].mxu0 %v161
    %v325 = vpop.f32.mrb[0].mxu0
    %v326 = vadd.f32 %v256, %v325
    %v327 = vpop.f32.mrb[0].mxu0
    %328 = vdwg.mxu0
    %329 = vmatprep.subr.mxu0 0.0
    %330 = vmatpush1.msra.mxu0 %v81
    %331 = vmatprep.subr.mxu0 0.0
    %332 = vmatpush1.msra.mxu0 %v82
    %333 = vmatprep.subr.mxu0 0.0
    %334 = vmatpush1.msra.mxu0 %v83
    %335 = vmatprep.subr.mxu0 0.0
    %336 = vmatpush1.msra.mxu0 %v84
    %337 = vmatprep.subr.mxu0 0.0
    %338 = vmatpush1.msra.mxu0 %v85
    %339 = vmatprep.subr.mxu0 0.0
    %340 = vmatpush1.msra.mxu0 %v86
    %341 = vmatprep.subr.mxu0 0.0
    %342 = vmatpush1.msra.mxu0 %v87
    %343 = vmatprep.subr.mxu0 0.0
    %344 = vmatpush1.msra.mxu0 %v88
    %345 = vmatprep.subr.mxu0 0.0
    %346 = vmatpush1.msra.mxu0 %v89
    %347 = vmatprep.subr.mxu0 0.0
    %348 = vmatpush1.msra.mxu0 %v90
    %349 = vmatprep.subr.mxu0 0.0
    %350 = vmatpush1.msra.mxu0 %v91
    %351 = vmatprep.subr.mxu0 0.0
    %352 = vmatpush1.msra.mxu0 %v92
    %353 = vmatprep.subr.mxu0 0.0
    %354 = vmatpush1.msra.mxu0 %v93
    %355 = vmatprep.subr.mxu0 0.0
    %356 = vmatpush1.msra.mxu0 %v94
    %357 = vmatprep.subr.mxu0 0.0
    %358 = vmatpush1.msra.mxu0 %v95
    %359 = vmatprep.subr.mxu0 0.0
    %360 = vmatpush1.msra.mxu0 %v96
    %361 = vmatprep.subr.mxu0 0.0
    %362 = vmatpush1.msra.mxu0 %v97
    %363 = vmatprep.subr.mxu0 0.0
    %364 = vmatpush1.msra.mxu0 %v98
    %365 = vmatprep.subr.mxu0 0.0
    %366 = vmatpush1.msra.mxu0 %v99
    %367 = vmatprep.subr.mxu0 0.0
    %368 = vmatpush1.msra.mxu0 %v100
    %369 = vmatprep.subr.mxu0 0.0
    %370 = vmatpush1.msra.mxu0 %v101
    %371 = vmatprep.subr.mxu0 0.0
    %372 = vmatpush1.msra.mxu0 %v102
    %373 = vmatprep.subr.mxu0 0.0
    %374 = vmatpush1.msra.mxu0 %v103
    %375 = vmatprep.subr.mxu0 0.0
    %376 = vmatpush1.msra.mxu0 %v104
    %377 = vmatprep.subr.mxu0 0.0
    %378 = vmatpush1.msra.mxu0 %v105
    %379 = vmatprep.subr.mxu0 0.0
    %380 = vmatpush1.msra.mxu0 %v106
    %381 = vmatprep.subr.mxu0 0.0
    %382 = vmatpush1.msra.mxu0 %v107
    %383 = vmatprep.subr.mxu0 0.0
    %384 = vmatpush1.msra.mxu0 %v108
    %385 = vmatprep.subr.mxu0 0.0
    %386 = vmatpush1.msra.mxu0 %v109
    %387 = vmatprep.subr.mxu0 0.0
    %388 = vmatpush1.msra.mxu0 %v110
    %389 = vmatprep.subr.mxu0 0.0
    %390 = vmatpush1.msra.mxu0 %v111
    %391 = vmatprep.subr.mxu0 0.0
    %392 = vmatpush1.msra.mxu0 %v112
    %393 = vmatprep.mubr.f32.mxu0 %v179
    %394 = vmatmul.mubr.f32.gmra.mrb[0].mxu0 %v171
    %v395 = vpop.f32.mrb[0].mxu0
    %v396 = vadd.f32 %v326, %v395
    %v397 = vpop.f32.mrb[0].mxu0
    %398 = vdwg.mxu0
    %399 = vmatprep.subr.mxu0 0.0
    %400 = vmatpush1.msra.mxu0 %v113
    %401 = vmatprep.subr.mxu0 0.0
    %402 = vmatpush1.msra.mxu0 %v114
    %403 = vmatprep.subr.mxu0 0.0
    %404 = vmatpush1.msra.mxu0 %v115
    %405 = vmatprep.subr.mxu0 0.0
    %406 = vmatpush1.msra.mxu0 %v116
    %407 = vmatprep.subr.mxu0 0.0
    %408 = vmatpush1.msra.mxu0 %v117
    %409 = vmatprep.subr.mxu0 0.0
    %410 = vmatpush1.msra.mxu0 %v118
    %411 = vmatprep.subr.mxu0 0.0
    %412 = vmatpush1.msra.mxu0 %v119
    %413 = vmatprep.subr.mxu0 0.0
    %414 = vmatpush1.msra.mxu0 %v120
    %415 = vmatprep.subr.mxu0 0.0
    %416 = vmatpush1.msra.mxu0 %v121
    %417 = vmatprep.subr.mxu0 0.0
    %418 = vmatpush1.msra.mxu0 %v122
    %419 = vmatprep.subr.mxu0 0.0
    %420 = vmatpush1.msra.mxu0 %v123
    %421 = vmatprep.subr.mxu0 0.0
    %422 = vmatpush1.msra.mxu0 %v124
    %423 = vmatprep.subr.mxu0 0.0
    %424 = vmatpush1.msra.mxu0 %v125
    %425 = vmatprep.subr.mxu0 0.0
    %426 = vmatpush1.msra.mxu0 %v126
    %427 = vmatprep.subr.mxu0 0.0
    %428 = vmatpush1.msra.mxu0 %v127
    %429 = vmatprep.subr.mxu0 0.0
    %430 = vmatpush1.msra.mxu0 %v128
    %431 = vmatprep.subr.mxu0 0.0
    %432 = vmatpush1.msra.mxu0 %v129
    %433 = vmatprep.subr.mxu0 0.0
    %434 = vmatpush1.msra.mxu0 %v130
    %435 = vmatprep.subr.mxu0 0.0
    %436 = vmatpush1.msra.mxu0 %v131
    %437 = vmatprep.subr.mxu0 0.0
    %438 = vmatpush1.msra.mxu0 %v132
    %439 = vmatprep.subr.mxu0 0.0
    %440 = vmatpush1.msra.mxu0 %v133
    %441 = vmatprep.subr.mxu0 0.0
    %442 = vmatpush1.msra.mxu0 %v134
    %443 = vmatprep.subr.mxu0 0.0
    %444 = vmatpush1.msra.mxu0 %v135
    %445 = vmatprep.subr.mxu0 0.0
    %446 = vmatpush1.msra.mxu0 %v136
    %447 = vmatprep.subr.mxu0 0.0
    %448 = vmatpush1.msra.mxu0 %v137
    %449 = vmatprep.subr.mxu0 0.0
    %450 = vmatpush1.msra.mxu0 %v138
    %451 = vmatprep.subr.mxu0 0.0
    %452 = vmatpush1.msra.mxu0 %v139
    %453 = vmatprep.subr.mxu0 0.0
    %454 = vmatpush1.msra.mxu0 %v140
    %455 = vmatprep.subr.mxu0 0.0
    %456 = vmatpush1.msra.mxu0 %v141
    %457 = vmatprep.subr.mxu0 0.0
    %458 = vmatpush1.msra.mxu0 %v142
    %459 = vmatprep.subr.mxu0 0.0
    %460 = vmatpush1.msra.mxu0 %v143
    %461 = vmatprep.subr.mxu0 0.0
    %462 = vmatpush1.msra.mxu0 %v144
    %463 = vmatprep.mubr.f32.mxu0 %v180
    %464 = vmatmul.mubr.f32.gmra.mrb[0].mxu0 %v178
    %v465 = vpop.f32.mrb[0].mxu0
    %v466 = vadd.f32 %v396, %v465
    %v467 = vpop.f32.mrb[0].mxu0
    %468 = vdwg.mxu0
    %vm469 = vcmask 58368
    %v470 = vsel %vm469, %v466, -inf
    %471 = vmax.xlane.f32.xlu0 %v470
    %v472 = vpop.xlane.xlu0 %471
    %v473 = vsub.f32 %v466, %v472
    %v474 = vmul.f32 %v473, 1.442695
    %v475 = vpow.pop %v474
    %v476 = vsel %vm469, %v475, 0.0
    %477 = vadd.xlane.f32.xlu0 %v476
    %v478 = vpop.xlane.xlu0 %477
    %v479 = vrcp.pop %v478
    %v480 = vmul.f32 %v475, %v479
    %481 = vst.msk [vmem:[#allocation2] sm:$0x3] %vm469, %v480
    %v482 = vsel %vm469, %v480, 0.0
    %v483 = vrot.slane %v482, 4
    %v484 = vadd.f32 %v482, %v483
    %v485 = vrot.slane %v484, 2
    %v486 = vadd.f32 %v484, %v485
    %v487 = vrot.slane %v486, 1
    %v488 = vadd.f32 %v486, %v487
    %v489 = vrcp.pop 2.0
    %v490 = vmul.f32 %v488, %v489
    %v491 = vsub.f32 %v490, 0.125
    %v492 = vmul.f32 %v491, %v491
    %vm493 = vcmask 57344
    %v494 = vsel %vm493, %v492, 0.0
    %495 = vadd.xlane.f32.xlu0 %v494
    %v496 = vpop.xlane.xlu0 %495
    %v497 = vrot.slane %v496, 4
    %v498 = vadd.f32 %v496, %v497
    %v499 = vrot.slane %v498, 2
    %v500 = vadd.f32 %v498, %v499
    %v501 = vrot.slane %v500, 1
    %v502 = vadd.f32 %v500, %v501
    %s503 = vtos %v502
    %v504 = vstv %s503
    %v505 = vrcp.pop 8.0
    %v506 = vmul.f32 %v504, %v505
    %vm507 = vcmask 0
    %508 = vst.msk [vmem:[#allocation4] sm:$0x1] %vm507, %v506
    // Predicated region
    $region10: #{tpu_custom_call.1} parent=1 // pred_check
      _
    $region11: #{tpu_custom_call.1} parent=1 // pred_check_branch
      %510 = sbr.rel (0) target = $region13
    $region12: #{tpu_custom_call.1} parent=1 // pred_region
      %s512 = ssub.s32 32, 32
      %513 = vsyncadd [#allocation3], %s512
      %s515 = sshll.u32 [#allocation2], 4
      %s516 = int_to_ptr.vmem [resolvable:$true] %s515
      %518 = dma.vmem_to_hbm [thread:$0]  %s516, 32, %s2, [#allocation3]
    $region13: #{tpu_custom_call.1} parent=1 // pred_fallthru
      _
    // Predicated region
    $region14: #{tpu_custom_call.1} parent=1 // pred_check
      _
    $region15: #{tpu_custom_call.1} parent=1 // pred_check_branch
      %520 = sbr.rel (0) target = $region17
    $region16: #{tpu_custom_call.1} parent=1 // pred_region
      %s522 = ssub.s32 16, 16
      %523 = vsyncadd [#allocation5], %s522
      %s525 = sshll.u32 [#allocation4], 4
      %s526 = int_to_ptr.vmem [resolvable:$true] %s525
      %528 = dma.vmem_to_hbm [thread:$0]  %s526, 16, %s3, [#allocation5]
    $region17: #{tpu_custom_call.1} parent=1 // pred_fallthru
      _
    // Predicated region
    $region18: #{tpu_custom_call.1} parent=1 // pred_check
      _
    $region19: #{tpu_custom_call.1} parent=1 // pred_check_branch
      %530 = sbr.rel (0) target = $region21
    $region20: #{tpu_custom_call.1} parent=1 // pred_region
      %531 = dma.done [#allocation3], 32
    $region21: #{tpu_custom_call.1} parent=1 // pred_fallthru
      _
    // Predicated region
    $region22: #{tpu_custom_call.1} parent=1 // pred_check
      _
    $region23: #{tpu_custom_call.1} parent=1 // pred_check_branch
      %533 = sbr.rel (0) target = $region25
    $region24: #{tpu_custom_call.1} parent=1 // pred_region
      %534 = dma.done [#allocation5], 16
    $region25: #{tpu_custom_call.1} parent=1 // pred_fallthru
      _
    %535 = vsyncpa [#allocation3], 1
    %536 = vsyncpa [#allocation5], 1

</llo_original>
